<compile_context>
chip_gen: v6e
topology: v6e:2x2x1
jax: 0.10.0
libtpu: 0.0.40
codegen_flags: <defaults>
</compile_context>

<pallas_src>
import functools

import jax
import jax.numpy as jnp
from jax.experimental import pallas as pl
from jax.experimental.pallas import tpu as pltpu

LANE = 128      # TPU lane width: state_dim (K) and action_dim (N) are padded to this
HIDDEN = 256
MAX_TILE = 1024  # large-batch row tile


def _round_up(x, m):
    return ((x + m - 1) // m) * m


def _mlp_kernel(x_ref, w1_ref, wmid_ref, w5_ref, b_ref, o_ref, *, n_pad, hidden):
    """One batch tile of the 5-layer MLP.

    bf16 weights and bf16 inter-layer activations; f32 MXU accumulation;
    bias-add / ReLU in f32 on the VPU with a single bf16 cast per layer boundary.
    """
    # Layer 1: (tb, k_pad) bf16 @ (k_pad, 256) bf16 -> f32 acc
    acc = jnp.dot(x_ref[...], w1_ref[...], preferred_element_type=jnp.float32)
    h = jnp.maximum(acc + b_ref[0:1, :hidden], 0.0).astype(jnp.bfloat16)

    # Layers 2-4: (tb, 256) bf16 @ (256, 256) bf16 -> f32 acc
    for j in range(wmid_ref.shape[0]):
        acc = jnp.dot(h, wmid_ref[j], preferred_element_type=jnp.float32)
        h = jnp.maximum(acc + b_ref[j + 1:j + 2, :hidden], 0.0).astype(jnp.bfloat16)

    # Output layer: lane-dense (tb, n_pad) store; padded action columns are exact zeros.
    acc = jnp.dot(h, w5_ref[...], preferred_element_type=jnp.float32)
    o_ref[...] = (acc + b_ref[4:5, :n_pad]).astype(o_ref.dtype)


@functools.partial(jax.jit, static_argnames=("action_dim",))
def net_forward(obs, prepared, *, action_dim):
    """Pallas forward pass. obs: (batch, state_dim) f32 -> (batch, action_dim) f32."""
    batch, state_dim = obs.shape
    w1, wmid, w5, biases = prepared
    k_pad = w1.shape[0]          # 128-lane padded state_dim
    hidden = w1.shape[1]
    n_pad = w5.shape[1]          # 128-lane padded action_dim

    # Batch tiling: single tile up to MAX_TILE rows; larger batches tiled at MAX_TILE.
    tb = MAX_TILE if batch > MAX_TILE else _round_up(batch, 16)   # 16-row bf16 sublane pack
    pad_batch = _round_up(batch, tb)

    # Pad-and-cast obs to bf16 in the wrapper (halves the obs HBM->VMEM DMA).
    obs_p = jnp.pad(obs.astype(jnp.bfloat16),
                    ((0, pad_batch - batch), (0, k_pad - state_dim)))

    kernel = functools.partial(_mlp_kernel, n_pad=n_pad, hidden=hidden)

    out = pl.pallas_call(
        kernel,
        out_shape=jax.ShapeDtypeStruct((pad_batch, n_pad), jnp.float32),
        grid=(pad_batch // tb,),
        in_specs=[
            pl.BlockSpec((tb, k_pad), lambda i: (i, 0)),        # obs tile (pipelined)
            pl.BlockSpec(w1.shape, lambda i: (0, 0)),           # resident weights/biases
            pl.BlockSpec(wmid.shape, lambda i: (0, 0, 0)),
            pl.BlockSpec(w5.shape, lambda i: (0, 0)),
            pl.BlockSpec(biases.shape, lambda i: (0, 0)),
        ],
        out_specs=pl.BlockSpec((tb, n_pad), lambda i: (i, 0)),
        compiler_params=pltpu.CompilerParams(
            dimension_semantics=("parallel",),
            vmem_limit_bytes=16 << 20,
        ),
    )(obs_p, w1, wmid, w5, biases)

    return out[:batch, :action_dim]


def net_apply(obs, prepared, state=None, *, action_dim):
    """Mirrors Net.forward: returns (logits, state) with state passed through."""
    return net_forward(obs, prepared, action_dim=action_dim), state


def init_params(key, state_dim, action_dim, hidden=HIDDEN):
    """PyTorch-default-style init: U(-1/sqrt(fan_in), 1/sqrt(fan_in)).
    Weights are (in_features, out_features); biases are (1, out_features), f32."""
    dims = [state_dim, hidden, hidden, hidden, hidden, action_dim]
    params = []
    for i in range(5):
        fan_in, fan_out = dims[i], dims[i + 1]
        key, kw, kb = jax.random.split(key, 3)
        bound = 1.0 / (fan_in ** 0.5)
        w = jax.random.uniform(kw, (fan_in, fan_out), jnp.float32, -bound, bound)
        b = jax.random.uniform(kb, (1, fan_out), jnp.float32, -bound, bound)
        params.append((w, b))
    return params


def prepare_params(params, *, lane=LANE, weight_dtype=jnp.bfloat16):
    """Pack the 5 layers into 4 arrays (fewer DMA chains per call):
         w1     (k_pad, 256)          bf16  -- state_dim zero-padded to full lanes
         w_mid  (3, 256, 256)         bf16  -- layers 2..4 stacked
         w5     (256, n_pad)          bf16  -- action_dim zero-padded to full lanes
         biases (5, max(256, n_pad))  f32   -- all biases row-packed (added to f32 acc)
    TODO(synk): on v7x, consider fp8 (e4m3) weights instead of bf16 for another 2x
    weight-DMA cut (v7x MXU has no int8 path)."""
    (w1, b1), (w2, b2), (w3, b3), (w4, b4), (w5, b5) = params
    state_dim, hidden = w1.shape
    action_dim = w5.shape[1]
    k_pad = _round_up(state_dim, lane)
    n_pad = _round_up(action_dim, lane)
    bias_w = max(hidden, n_pad)

    w1_p = jnp.pad(w1, ((0, k_pad - state_dim), (0, 0))).astype(weight_dtype)
    wmid = jnp.stack([w2, w3, w4]).astype(weight_dtype)
    w5_p = jnp.pad(w5, ((0, 0), (0, n_pad - action_dim))).astype(weight_dtype)

    def pad_b(b):
        b = b.reshape(1, -1)
        return jnp.pad(b, ((0, 0), (0, bias_w - b.shape[1])))

    biases = jnp.concatenate([pad_b(b1), pad_b(b2), pad_b(b3), pad_b(b4), pad_b(b5)],
                             axis=0).astype(jnp.float32)
    return (w1_p, wmid, w5_p, biases)


def reference_forward_quantized(obs, params):
    """Pure-JAX reference using exactly the kernel's math (bf16 weights + bf16
    inter-layer activations, f32 accumulate / bias / ReLU) -- tight numerical check."""
    h = obs.astype(jnp.bfloat16)
    n = len(params)
    for i, (w, b) in enumerate(params):
        acc = jnp.dot(h, w.astype(jnp.bfloat16),
                      preferred_element_type=jnp.float32) + b.astype(jnp.float32)
        if i < n - 1:
            h = jnp.maximum(acc, 0.0).astype(jnp.bfloat16)
        else:
            h = acc
    return h


def reference_forward_f32(obs, params):
    h = obs
    for i, (w, b) in enumerate(params):
        h = h @ w + b
        if i < len(params) - 1:
            h = jnp.maximum(h, 0.0)
    return h


if __name__ == "__main__":
    key = jax.random.PRNGKey(0)
    batch, state_dim, action_dim = 2, 8, 4     # e.g. state_shape=(8,), action_shape=(4,)

    key, k_obs = jax.random.split(key)
    obs = jax.random.normal(k_obs, (batch, state_dim), dtype=jnp.float32)

    params = init_params(key, state_dim, action_dim)
    prepared = prepare_params(params)

    logits, state = net_apply(obs, prepared, state=None, action_dim=action_dim)
    jax.block_until_ready(logits)

    assert logits.shape == (batch, action_dim)
    assert state is None

    # Tight check against a reference that uses identical bf16 weight/activation math.
    ref_q = reference_forward_quantized(obs, params)
    assert jnp.allclose(logits, ref_q, atol=1e-2, rtol=1e-2), "mismatch vs quantized reference"

    # Informational: drift vs the full-f32 PyTorch-semantics reference.
    ref_f32 = reference_forward_f32(obs, params)
    max_diff = float(jnp.max(jnp.abs(logits - ref_f32)))
    print(f"max |pallas - f32 ref| = {max_diff:.3e}")

    print("KERNEL_OK")
</pallas_src>

<mosaic_0001>
module attributes {stable_mosaic.version = 11 : i64} {
  func.func @_mlp_kernel(%arg0: i32, %arg1: memref<16x128xbf16, #tpu.memory_space<vmem>>, %arg2: memref<128x256xbf16, #tpu.memory_space<vmem>>, %arg3: memref<3x256x256xbf16, #tpu.memory_space<vmem>>, %arg4: memref<256x128xbf16, #tpu.memory_space<vmem>>, %arg5: memref<5x256xf32, #tpu.memory_space<vmem>>, %arg6: memref<16x128xf32, #tpu.memory_space<vmem>>) attributes {dimension_semantics = [#tpu.dimension_semantics<parallel>], iteration_bounds = array<i64: 1>, scalar_prefetch = 0 : i64, scratch_operands = 0 : i64, tpu.core_type = #tpu.core_type<tc>, window_params = [{transform_indices = @transform_0, window_bounds = array<i64: 16, 128>}, {pipeline_mode = #tpu.pipeline_mode<synchronous>, transform_indices = @transform_1, window_bounds = array<i64: 128, 256>}, {pipeline_mode = #tpu.pipeline_mode<synchronous>, transform_indices = @transform_2, window_bounds = array<i64: 3, 256, 256>}, {pipeline_mode = #tpu.pipeline_mode<synchronous>, transform_indices = @transform_3, window_bounds = array<i64: 256, 128>}, {pipeline_mode = #tpu.pipeline_mode<synchronous>, transform_indices = @transform_4, window_bounds = array<i64: 5, 256>}, {transform_indices = @transform_5, window_bounds = array<i64: 16, 128>}]} {
    %c0 = arith.constant 0 : index
    %c0_0 = arith.constant 0 : index
    %0 = vector.load %arg1[%c0, %c0_0] : memref<16x128xbf16, #tpu.memory_space<vmem>>, vector<16x128xbf16>
    %c0_1 = arith.constant 0 : index
    %c0_2 = arith.constant 0 : index
    %1 = vector.load %arg2[%c0_1, %c0_2] : memref<128x256xbf16, #tpu.memory_space<vmem>>, vector<128x256xbf16>
    %cst = arith.constant dense<0.000000e+00> : vector<16x256xf32>
    %2 = tpu.matmul %0, %1, %cst {dimension_numbers = #tpu.dot_dimension_numbers<[1], [0], [0], [1], [0, 0, 1, 1], [], []>} : vector<16x128xbf16>, vector<128x256xbf16>, vector<16x256xf32> -> vector<16x256xf32>
    %c0_3 = arith.constant 0 : index
    %c0_4 = arith.constant 0 : index
    %3 = vector.load %arg5[%c0_3, %c0_4] : memref<5x256xf32, #tpu.memory_space<vmem>>, vector<1x256xf32>
    %4 = vector.broadcast %3 : vector<1x256xf32> to vector<16x256xf32>
    %5 = arith.addf %2, %4 : vector<16x256xf32>
    %cst_5 = arith.constant 0.000000e+00 : f32
    %6 = vector.broadcast %cst_5 : f32 to vector<16x256xf32>
    %7 = arith.maximumf %5, %6 : vector<16x256xf32>
    %8 = arith.truncf %7 : vector<16x256xf32> to vector<16x256xbf16>
    %c0_6 = arith.constant 0 : index
    %c0_7 = arith.constant 0 : index
    %c0_8 = arith.constant 0 : index
    %9 = vector.load %arg3[%c0_6, %c0_7, %c0_8] : memref<3x256x256xbf16, #tpu.memory_space<vmem>>, vector<1x256x256xbf16>
    %10 = vector.shape_cast %9 : vector<1x256x256xbf16> to vector<256x256xbf16>
    %cst_9 = arith.constant dense<0.000000e+00> : vector<16x256xf32>
    %11 = tpu.matmul %8, %10, %cst_9 {dimension_numbers = #tpu.dot_dimension_numbers<[1], [0], [0], [1], [0, 0, 1, 1], [], []>} : vector<16x256xbf16>, vector<256x256xbf16>, vector<16x256xf32> -> vector<16x256xf32>
    %c1 = arith.constant 1 : index
    %c0_10 = arith.constant 0 : index
    %12 = vector.load %arg5[%c1, %c0_10] : memref<5x256xf32, #tpu.memory_space<vmem>>, vector<1x256xf32>
    %13 = vector.broadcast %12 : vector<1x256xf32> to vector<16x256xf32>
    %14 = arith.addf %11, %13 : vector<16x256xf32>
    %cst_11 = arith.constant 0.000000e+00 : f32
    %15 = vector.broadcast %cst_11 : f32 to vector<16x256xf32>
    %16 = arith.maximumf %14, %15 : vector<16x256xf32>
    %17 = arith.truncf %16 : vector<16x256xf32> to vector<16x256xbf16>
    %c1_12 = arith.constant 1 : index
    %c0_13 = arith.constant 0 : index
    %c0_14 = arith.constant 0 : index
    %18 = vector.load %arg3[%c1_12, %c0_13, %c0_14] : memref<3x256x256xbf16, #tpu.memory_space<vmem>>, vector<1x256x256xbf16>
    %19 = vector.shape_cast %18 : vector<1x256x256xbf16> to vector<256x256xbf16>
    %cst_15 = arith.constant dense<0.000000e+00> : vector<16x256xf32>
    %20 = tpu.matmul %17, %19, %cst_15 {dimension_numbers = #tpu.dot_dimension_numbers<[1], [0], [0], [1], [0, 0, 1, 1], [], []>} : vector<16x256xbf16>, vector<256x256xbf16>, vector<16x256xf32> -> vector<16x256xf32>
    %c2 = arith.constant 2 : index
    %c0_16 = arith.constant 0 : index
    %21 = vector.load %arg5[%c2, %c0_16] : memref<5x256xf32, #tpu.memory_space<vmem>>, vector<1x256xf32>
    %22 = vector.broadcast %21 : vector<1x256xf32> to vector<16x256xf32>
    %23 = arith.addf %20, %22 : vector<16x256xf32>
    %cst_17 = arith.constant 0.000000e+00 : f32
    %24 = vector.broadcast %cst_17 : f32 to vector<16x256xf32>
    %25 = arith.maximumf %23, %24 : vector<16x256xf32>
    %26 = arith.truncf %25 : vector<16x256xf32> to vector<16x256xbf16>
    %c2_18 = arith.constant 2 : index
    %c0_19 = arith.constant 0 : index
    %c0_20 = arith.constant 0 : index
    %27 = vector.load %arg3[%c2_18, %c0_19, %c0_20] : memref<3x256x256xbf16, #tpu.memory_space<vmem>>, vector<1x256x256xbf16>
    %28 = vector.shape_cast %27 : vector<1x256x256xbf16> to vector<256x256xbf16>
    %cst_21 = arith.constant dense<0.000000e+00> : vector<16x256xf32>
    %29 = tpu.matmul %26, %28, %cst_21 {dimension_numbers = #tpu.dot_dimension_numbers<[1], [0], [0], [1], [0, 0, 1, 1], [], []>} : vector<16x256xbf16>, vector<256x256xbf16>, vector<16x256xf32> -> vector<16x256xf32>
    %c3 = arith.constant 3 : index
    %c0_22 = arith.constant 0 : index
    %30 = vector.load %arg5[%c3, %c0_22] : memref<5x256xf32, #tpu.memory_space<vmem>>, vector<1x256xf32>
    %31 = vector.broadcast %30 : vector<1x256xf32> to vector<16x256xf32>
    %32 = arith.addf %29, %31 : vector<16x256xf32>
    %cst_23 = arith.constant 0.000000e+00 : f32
    %33 = vector.broadcast %cst_23 : f32 to vector<16x256xf32>
    %34 = arith.maximumf %32, %33 : vector<16x256xf32>
    %35 = arith.truncf %34 : vector<16x256xf32> to vector<16x256xbf16>
    %c0_24 = arith.constant 0 : index
    %c0_25 = arith.constant 0 : index
    %36 = vector.load %arg4[%c0_24, %c0_25] : memref<256x128xbf16, #tpu.memory_space<vmem>>, vector<256x128xbf16>
    %cst_26 = arith.constant dense<0.000000e+00> : vector<16x128xf32>
    %37 = tpu.matmul %35, %36, %cst_26 {dimension_numbers = #tpu.dot_dimension_numbers<[1], [0], [0], [1], [0, 0, 1, 1], [], []>} : vector<16x256xbf16>, vector<256x128xbf16>, vector<16x128xf32> -> vector<16x128xf32>
    %c4 = arith.constant 4 : index
    %c0_27 = arith.constant 0 : index
    %38 = vector.load %arg5[%c4, %c0_27] : memref<5x256xf32, #tpu.memory_space<vmem>>, vector<1x128xf32>
    %39 = vector.broadcast %38 : vector<1x128xf32> to vector<16x128xf32>
    %40 = arith.addf %37, %39 : vector<16x128xf32>
    %c0_28 = arith.constant 0 : index
    %c0_29 = arith.constant 0 : index
    %41 = vector.load %arg6[%c0_28, %c0_29] : memref<16x128xf32, #tpu.memory_space<vmem>>, vector<16x128xf32>
    tpu.vector_store %arg6[%c0_28, %c0_29], %40 {strides = array<i32>} : memref<16x128xf32, #tpu.memory_space<vmem>>, vector<16x128xf32>,
    return
  }
  func.func @transform_0(%arg0: i32) -> (i32, i32) {
    %c0_i32 = arith.constant 0 : i32
    %c0_i32_0 = arith.constant 0 : i32
    return %arg0, %c0_i32 : i32, i32
  }
  func.func @transform_1(%arg0: i32) -> (i32, i32) {
    %c0_i32 = arith.constant 0 : i32
    %c0_i32_0 = arith.constant 0 : i32
    %c0_i32_1 = arith.constant 0 : i32
    return %c0_i32, %c0_i32_0 : i32, i32
  }
  func.func @transform_2(%arg0: i32) -> (i32, i32, i32) {
    %c0_i32 = arith.constant 0 : i32
    %c0_i32_0 = arith.constant 0 : i32
    %c0_i32_1 = arith.constant 0 : i32
    %c0_i32_2 = arith.constant 0 : i32
    return %c0_i32, %c0_i32_0, %c0_i32_1 : i32, i32, i32
  }
  func.func @transform_3(%arg0: i32) -> (i32, i32) {
    %c0_i32 = arith.constant 0 : i32
    %c0_i32_0 = arith.constant 0 : i32
    %c0_i32_1 = arith.constant 0 : i32
    return %c0_i32, %c0_i32_0 : i32, i32
  }
  func.func @transform_4(%arg0: i32) -> (i32, i32) {
    %c0_i32 = arith.constant 0 : i32
    %c0_i32_0 = arith.constant 0 : i32
    %c0_i32_1 = arith.constant 0 : i32
    return %c0_i32, %c0_i32_0 : i32, i32
  }
  func.func @transform_5(%arg0: i32) -> (i32, i32) {
    %c0_i32 = arith.constant 0 : i32
    %c0_i32_0 = arith.constant 0 : i32
    return %arg0, %c0_i32 : i32, i32
  }
}

</mosaic_0001>

<llo_original>
// kernel: net_forward.1
$region0: #{net_forward.1}
  #allocation0 [shape = 'u32[]', space=smem, size = 0x4, offset = 0x4, fixed_abs, tag = 'smem constant byte address 0x4 - core index']
  #allocation1 [shape = 'u32[144,128]{1,0:T(1,128)}', space=vmem, size = 0x12000, scoped, tag = 'internal scratch']
  %s0 = inlined_call_operand.vmem [shape: bf16[16,128], index: 0, kind: input, shape index: {}]
  %s1 = inlined_call_operand.hbm [shape: bf16[128,256], index: 1, kind: input, shape index: {}]
  %s2 = inlined_call_operand.hbm [shape: bf16[3,256,256], index: 2, kind: input, shape index: {}]
  %s3 = inlined_call_operand.hbm [shape: bf16[256,128], index: 3, kind: input, shape index: {}]
  %s4 = inlined_call_operand.vmem [shape: f32[5,256], index: 4, kind: input, shape index: {}]
  %s5 = inlined_call_operand.vmem [shape: f32[16,128], index: 5, kind: output, shape index: {}]
  %s6 = sld [smem:[#allocation0]]
  $region42: #{net_forward.1} parent=0
    _
  %s8 = ssub.s32 1, %s6
  %s9 = scalar_select 0, %s8, %s6
  $region1: #{net_forward.1} parent=0
    #allocation2 [shape = 'u8[65536]{0}', space=vmem, size = 0x10000, scoped, tag = 'input window, operand 1, single buffered']
    #allocation3 [shape = 's32[1]{0}', space=sflag, size = 0x4, scoped, tag = 'scoped memory for net_forward.1']
    #allocation4 [shape = 'u8[393216]{0}', space=vmem, size = 0x60000, scoped, tag = 'input window, operand 2, single buffered']
    #allocation5 [shape = 's32[1]{0}', space=sflag, size = 0x4, scoped, tag = 'scoped memory for net_forward.1']
    #allocation6 [shape = 'u8[65536]{0}', space=vmem, size = 0x10000, scoped, tag = 'input window, operand 3, single buffered']
    %10 = vsyncpa [#allocation3], 0
    %11 = vsyncpa [#allocation5], 0
    // Predicated region
    $region2: #{net_forward.1} parent=1 // pred_check
      _
    $region3: #{net_forward.1} parent=1 // pred_check_branch
      %13 = sbr.rel (0) target = $region5
    $region4: #{net_forward.1} parent=1 // pred_region
      _
    $region5: #{net_forward.1} parent=1 // pred_fallthru
      _
    // Predicated region
    $region6: #{net_forward.1} parent=1 // pred_check
      _
    $region7: #{net_forward.1} parent=1 // pred_check_branch
      %15 = sbr.rel (0) target = $region9
    $region8: #{net_forward.1} parent=1 // pred_region
      %s17 = ssub.s32 2048, 2048
      %18 = vsyncadd [#allocation3], %s17
      %s19 = sshll.u32 [#allocation2], 4
      %s20 = int_to_ptr.vmem [resolvable:$true] %s19
      %25 = dma.hbm_to_vmem [thread:$0]  %s1, 2048, %s20, [#allocation3], 128, 128, 8
    $region9: #{net_forward.1} parent=1 // pred_fallthru
      _
    // Predicated region
    $region10: #{net_forward.1} parent=1 // pred_check
      _
    $region11: #{net_forward.1} parent=1 // pred_check_branch
      %27 = sbr.rel (0) target = $region13
    $region12: #{net_forward.1} parent=1 // pred_region
      %s29 = ssub.s32 12288, 12288
      %30 = vsyncadd [#allocation5], %s29
      %s31 = sshll.u32 [#allocation4], 4
      %s32 = int_to_ptr.vmem [resolvable:$true] %s31
      %37 = dma.hbm_to_vmem [thread:$0]  %s2, 12288, %s32, [#allocation5], 128, 128, 8
    $region13: #{net_forward.1} parent=1 // pred_fallthru
      _
    // Predicated region
    $region14: #{net_forward.1} parent=1 // pred_check
      _
    $region15: #{net_forward.1} parent=1 // pred_check_branch
      %39 = sbr.rel (0) target = $region17
    $region16: #{net_forward.1} parent=1 // pred_region
      %s41 = ssub.s32 2048, 2048
      %42 = vsyncadd [#allocation5], %s41
      %s43 = sshll.u32 [#allocation6], 4
      %s44 = int_to_ptr.vmem [resolvable:$true] %s43
      %49 = dma.hbm_to_vmem [thread:$0]  %s3, 2048, %s44, [#allocation5], 64, 64, 4
    $region17: #{net_forward.1} parent=1 // pred_fallthru
      _
    // Predicated region
    $region18: #{net_forward.1} parent=1 // pred_check
      _
    $region19: #{net_forward.1} parent=1 // pred_check_branch
      %51 = sbr.rel (0) target = $region21
    $region20: #{net_forward.1} parent=1 // pred_region
      _
    $region21: #{net_forward.1} parent=1 // pred_fallthru
      _
    // Predicated region
    $region22: #{net_forward.1} parent=1 // pred_check
      _
    $region23: #{net_forward.1} parent=1 // pred_check_branch
      %53 = sbr.rel (0) target = $region25
    $region24: #{net_forward.1} parent=1 // pred_region
      %54 = dma.done [#allocation3], 2048
    $region25: #{net_forward.1} parent=1 // pred_fallthru
      _
    // Predicated region
    $region26: #{net_forward.1} parent=1 // pred_check
      _
    $region27: #{net_forward.1} parent=1 // pred_check_branch
      %56 = sbr.rel (0) target = $region29
    $region28: #{net_forward.1} parent=1 // pred_region
      %57 = dma.done [#allocation5], 12288
    $region29: #{net_forward.1} parent=1 // pred_fallthru
      _
    // Predicated region
    $region30: #{net_forward.1} parent=1 // pred_check
      _
    $region31: #{net_forward.1} parent=1 // pred_check_branch
      %59 = sbr.rel (0) target = $region33
    $region32: #{net_forward.1} parent=1 // pred_region
      %60 = dma.done [#allocation5], 2048
    $region33: #{net_forward.1} parent=1 // pred_fallthru
      _
    %v62 = vld [vmem:[%s0] sm:$0xf]
    %v63 = vld [vmem:[%s0 + $0x4] sm:$0xf]
    %v64 = vld [vmem:[#allocation2] sm:$0xff]
    %v65 = vld [vmem:[#allocation2 + $0x8] sm:$0xff]
    %v66 = vld [vmem:[#allocation2 + $0x10] sm:$0xff]
    %v67 = vld [vmem:[#allocation2 + $0x18] sm:$0xff]
    %v68 = vld [vmem:[#allocation2 + $0x20] sm:$0xff]
    %v69 = vld [vmem:[#allocation2 + $0x28] sm:$0xff]
    %v70 = vld [vmem:[#allocation2 + $0x30] sm:$0xff]
    %v71 = vld [vmem:[#allocation2 + $0x38] sm:$0xff]
    %v72 = vld [vmem:[#allocation2 + $0x40] sm:$0xff]
    %v73 = vld [vmem:[#allocation2 + $0x48] sm:$0xff]
    %v74 = vld [vmem:[#allocation2 + $0x50] sm:$0xff]
    %v75 = vld [vmem:[#allocation2 + $0x58] sm:$0xff]
    %v76 = vld [vmem:[#allocation2 + $0x60] sm:$0xff]
    %v77 = vld [vmem:[#allocation2 + $0x68] sm:$0xff]
    %v78 = vld [vmem:[#allocation2 + $0x70] sm:$0xff]
    %v79 = vld [vmem:[#allocation2 + $0x78] sm:$0xff]
    %v80 = vld [vmem:[%s4] ss:$8 sm:$0x3]
    %v82 = vlaneseq
    %v83 = vshrl.u32 %v82, 7
    %v84 = vsub.s32 0, %v83
    %v85 = vrot.slane %v80, %v84
    %v86 = vlaneseq
    %v87 = vshrl.u32 %v86, 7
    %v88 = vsub.s32 1, %v87
    %v89 = vrot.slane %v80, %v88
    %v94 = vunpack.c.l.b16 %v62
    %v95 = vunpack.c.l.b16 %v63
    %v96 = vpack.c.b16 %v95, %v94
    %v114 = vunpack.c.l.b16 %v64
    %v115 = vunpack.c.h.b16 %v64
    %v116 = vunpack.c.l.b16 %v65
    %v117 = vunpack.c.h.b16 %v65
    %v118 = vunpack.c.l.b16 %v66
    %v119 = vunpack.c.h.b16 %v66
    %v120 = vunpack.c.l.b16 %v67
    %v121 = vunpack.c.h.b16 %v67
    %v122 = vunpack.c.l.b16 %v68
    %v123 = vunpack.c.h.b16 %v68
    %v124 = vunpack.c.l.b16 %v69
    %v125 = vunpack.c.h.b16 %v69
    %v126 = vunpack.c.l.b16 %v70
    %v127 = vunpack.c.h.b16 %v70
    %v128 = vunpack.c.l.b16 %v71
    %v129 = vunpack.c.h.b16 %v71
    %v130 = vunpack.c.l.b16 %v72
    %v131 = vunpack.c.h.b16 %v72
    %v132 = vunpack.c.l.b16 %v73
    %v133 = vunpack.c.h.b16 %v73
    %v134 = vunpack.c.l.b16 %v74
    %v135 = vunpack.c.h.b16 %v74
    %v136 = vunpack.c.l.b16 %v75
    %v137 = vunpack.c.h.b16 %v75
    %v138 = vunpack.c.l.b16 %v76
    %v139 = vunpack.c.h.b16 %v76
    %v140 = vunpack.c.l.b16 %v77
    %v141 = vunpack.c.h.b16 %v77
    %v142 = vunpack.c.l.b16 %v78
    %v143 = vunpack.c.h.b16 %v78
    %v144 = vunpack.c.l.b16 %v79
    %v145 = vunpack.c.h.b16 %v79
    %v146 = vpack.c.b16 %v116, %v114
    %v147 = vpack.c.b16 %v117, %v115
    %v148 = vpack.c.b16 %v120, %v118
    %v149 = vpack.c.b16 %v121, %v119
    %v150 = vpack.c.b16 %v124, %v122
    %v151 = vpack.c.b16 %v125, %v123
    %v152 = vpack.c.b16 %v128, %v126
    %v153 = vpack.c.b16 %v129, %v127
    %v154 = vpack.c.b16 %v132, %v130
    %v155 = vpack.c.b16 %v133, %v131
    %v156 = vpack.c.b16 %v136, %v134
    %v157 = vpack.c.b16 %v137, %v135
    %v158 = vpack.c.b16 %v140, %v138
    %v159 = vpack.c.b16 %v141, %v139
    %v160 = vpack.c.b16 %v144, %v142
    %v161 = vpack.c.b16 %v145, %v143
    %178 = vmatprep.subr.bf16.mxu0 %v161
    %179 = vmatpush1.bf16.msra.mxu0 %v160
    %180 = vmatprep.subr.bf16.mxu0 %v159
    %181 = vmatpush1.bf16.msra.mxu0 %v158
    %182 = vmatprep.subr.bf16.mxu0 %v157
    %183 = vmatpush1.bf16.msra.mxu0 %v156
    %184 = vmatprep.subr.bf16.mxu0 %v155
    %185 = vmatpush1.bf16.msra.mxu0 %v154
    %186 = vmatprep.subr.bf16.mxu0 %v153
    %187 = vmatpush1.bf16.msra.mxu0 %v152
    %188 = vmatprep.subr.bf16.mxu0 %v151
    %189 = vmatpush1.bf16.msra.mxu0 %v150
    %190 = vmatprep.subr.bf16.mxu0 %v149
    %191 = vmatpush1.bf16.msra.mxu0 %v148
    %192 = vmatprep.subr.bf16.mxu0 %v147
    %193 = vmatpush1.bf16.msra.mxu0 %v146
    %194 = vmatprep.subr.bf16.mxu0 0
    %195 = vmatpush2.bf16.msra.mxu0 0
    %196 = vmatprep.subr.bf16.mxu0 0
    %197 = vmatpush2.bf16.msra.mxu0 0
    %198 = vmatprep.subr.bf16.mxu0 0
    %199 = vmatpush2.bf16.msra.mxu0 0
    %200 = vmatprep.subr.bf16.mxu0 0
    %201 = vmatpush2.bf16.msra.mxu0 0
    %202 = vmatprep.subr.bf16.mxu0 0
    %203 = vmatpush2.bf16.msra.mxu0 0
    %204 = vmatprep.subr.bf16.mxu0 0
    %205 = vmatpush2.bf16.msra.mxu0 0
    %206 = vmatprep.subr.bf16.mxu0 0
    %207 = vmatpush2.bf16.msra.mxu0 0
    %208 = vmatprep.subr.bf16.mxu0 0
    %209 = vmatpush2.bf16.msra.mxu0 0
    %210 = vmatprep.mubr.bf16.mxu0 0
    %211 = vmatmul.mubr.bf16.gmra.mxu0 %v96
    %v212 = vpop.f32.mrf.mxu0
    %v213 = vadd.f32 %v85, %v212
    %v214 = vpop.f32.mrf.mxu0
    %v215 = vadd.f32 %v89, %v214
    %v216 = vpop.f32.mrf.mxu0
    %v217 = vadd.f32 %v85, %v216
    %v218 = vpop.f32.mrf.mxu0
    %v219 = vadd.f32 %v89, %v218
    %220 = vdwg.mxu0
    %v221 = vmax.f32 %v213, 0.0
    %v222 = vmax.f32 %v215, 0.0
    %v223 = vmax.f32 %v217, 0.0
    %v224 = vmax.f32 %v219, 0.0
    %v225 = vpack.c.bf16 %v223, %v221
    %v226 = vpack.c.bf16 %v224, %v222
    %v227 = vld [vmem:[#allocation4] sm:$0xff]
    %v228 = vld [vmem:[#allocation4 + $0x8] sm:$0xff]
    %v229 = vld [vmem:[#allocation4 + $0x10] sm:$0xff]
    %v230 = vld [vmem:[#allocation4 + $0x18] sm:$0xff]
    %v231 = vld [vmem:[#allocation4 + $0x20] sm:$0xff]
    %v232 = vld [vmem:[#allocation4 + $0x28] sm:$0xff]
    %v233 = vld [vmem:[#allocation4 + $0x30] sm:$0xff]
    %v234 = vld [vmem:[#allocation4 + $0x38] sm:$0xff]
    %v235 = vld [vmem:[#allocation4 + $0x40] sm:$0xff]
    %v236 = vld [vmem:[#allocation4 + $0x48] sm:$0xff]
    %v237 = vld [vmem:[#allocation4 + $0x50] sm:$0xff]
    %v238 = vld [vmem:[#allocation4 + $0x58] sm:$0xff]
    %v239 = vld [vmem:[#allocation4 + $0x60] sm:$0xff]
    %v240 = vld [vmem:[#allocation4 + $0x68] sm:$0xff]
    %v241 = vld [vmem:[#allocation4 + $0x70] sm:$0xff]
    %v242 = vld [vmem:[#allocation4 + $0x78] sm:$0xff]
    %v243 = vld [vmem:[#allocation4 + $0x80] sm:$0xff]
    %v244 = vld [vmem:[#allocation4 + $0x88] sm:$0xff]
    %v245 = vld [vmem:[#allocation4 + $0x90] sm:$0xff]
    %v246 = vld [vmem:[#allocation4 + $0x98] sm:$0xff]
    %v247 = vld [vmem:[#allocation4 + $0xa0] sm:$0xff]
    %v248 = vld [vmem:[#allocation4 + $0xa8] sm:$0xff]
    %v249 = vld [vmem:[#allocation4 + $0xb0] sm:$0xff]
    %v250 = vld [vmem:[#allocation4 + $0xb8] sm:$0xff]
    %v251 = vld [vmem:[#allocation4 + $0xc0] sm:$0xff]
    %v252 = vld [vmem:[#allocation4 + $0xc8] sm:$0xff]
    %v253 = vld [vmem:[#allocation4 + $0xd0] sm:$0xff]
    %v254 = vld [vmem:[#allocation4 + $0xd8] sm:$0xff]
    %v255 = vld [vmem:[#allocation4 + $0xe0] sm:$0xff]
    %v256 = vld [vmem:[#allocation4 + $0xe8] sm:$0xff]
    %v257 = vld [vmem:[#allocation4 + $0xf0] sm:$0xff]
    %v258 = vld [vmem:[#allocation4 + $0xf8] sm:$0xff]
    %s259 = scalar_lea.vmem %s4, 1
    %v260 = vld [vmem:[%s259] ss:$8 sm:$0x3]
    %v262 = vlaneseq
    %v263 = vshrl.u32 %v262, 7
    %v264 = vsub.s32 0, %v263
    %v265 = vrot.slane %v260, %v264
    %v266 = vlaneseq
    %v267 = vshrl.u32 %v266, 7
    %v268 = vsub.s32 1, %v267
    %v269 = vrot.slane %v260, %v268
    %v304 = vunpack.c.l.b16 %v227
    %v305 = vunpack.c.h.b16 %v227
    %v306 = vunpack.c.l.b16 %v228
    %v307 = vunpack.c.h.b16 %v228
    %v308 = vunpack.c.l.b16 %v229
    %v309 = vunpack.c.h.b16 %v229
    %v310 = vunpack.c.l.b16 %v230
    %v311 = vunpack.c.h.b16 %v230
    %v312 = vunpack.c.l.b16 %v231
    %v313 = vunpack.c.h.b16 %v231
    %v314 = vunpack.c.l.b16 %v232
    %v315 = vunpack.c.h.b16 %v232
    %v316 = vunpack.c.l.b16 %v233
    %v317 = vunpack.c.h.b16 %v233
    %v318 = vunpack.c.l.b16 %v234
    %v319 = vunpack.c.h.b16 %v234
    %v320 = vunpack.c.l.b16 %v235
    %v321 = vunpack.c.h.b16 %v235
    %v322 = vunpack.c.l.b16 %v236
    %v323 = vunpack.c.h.b16 %v236
    %v324 = vunpack.c.l.b16 %v237
    %v325 = vunpack.c.h.b16 %v237
    %v326 = vunpack.c.l.b16 %v238
    %v327 = vunpack.c.h.b16 %v238
    %v328 = vunpack.c.l.b16 %v239
    %v329 = vunpack.c.h.b16 %v239
    %v330 = vunpack.c.l.b16 %v240
    %v331 = vunpack.c.h.b16 %v240
    %v332 = vunpack.c.l.b16 %v241
    %v333 = vunpack.c.h.b16 %v241
    %v334 = vunpack.c.l.b16 %v242
    %v335 = vunpack.c.h.b16 %v242
    %v336 = vunpack.c.l.b16 %v243
    %v337 = vunpack.c.h.b16 %v243
    %v338 = vunpack.c.l.b16 %v244
    %v339 = vunpack.c.h.b16 %v244
    %v340 = vunpack.c.l.b16 %v245
    %v341 = vunpack.c.h.b16 %v245
    %v342 = vunpack.c.l.b16 %v246
    %v343 = vunpack.c.h.b16 %v246
    %v344 = vunpack.c.l.b16 %v247
    %v345 = vunpack.c.h.b16 %v247
    %v346 = vunpack.c.l.b16 %v248
    %v347 = vunpack.c.h.b16 %v248
    %v348 = vunpack.c.l.b16 %v249
    %v349 = vunpack.c.h.b16 %v249
    %v350 = vunpack.c.l.b16 %v250
    %v351 = vunpack.c.h.b16 %v250
    %v352 = vunpack.c.l.b16 %v251
    %v353 = vunpack.c.h.b16 %v251
    %v354 = vunpack.c.l.b16 %v252
    %v355 = vunpack.c.h.b16 %v252
    %v356 = vunpack.c.l.b16 %v253
    %v357 = vunpack.c.h.b16 %v253
    %v358 = vunpack.c.l.b16 %v254
    %v359 = vunpack.c.h.b16 %v254
    %v360 = vunpack.c.l.b16 %v255
    %v361 = vunpack.c.h.b16 %v255
    %v362 = vunpack.c.l.b16 %v256
    %v363 = vunpack.c.h.b16 %v256
    %v364 = vunpack.c.l.b16 %v257
    %v365 = vunpack.c.h.b16 %v257
    %v366 = vunpack.c.l.b16 %v258
    %v367 = vunpack.c.h.b16 %v258
    %v368 = vpack.c.b16 %v306, %v304
    %v369 = vpack.c.b16 %v307, %v305
    %v370 = vpack.c.b16 %v310, %v308
    %v371 = vpack.c.b16 %v311, %v309
    %v372 = vpack.c.b16 %v314, %v312
    %v373 = vpack.c.b16 %v315, %v313
    %v374 = vpack.c.b16 %v318, %v316
    %v375 = vpack.c.b16 %v319, %v317
    %v376 = vpack.c.b16 %v322, %v320
    %v377 = vpack.c.b16 %v323, %v321
    %v378 = vpack.c.b16 %v326, %v324
    %v379 = vpack.c.b16 %v327, %v325
    %v380 = vpack.c.b16 %v330, %v328
    %v381 = vpack.c.b16 %v331, %v329
    %v382 = vpack.c.b16 %v334, %v332
    %v383 = vpack.c.b16 %v335, %v333
    %v384 = vpack.c.b16 %v338, %v336
    %v385 = vpack.c.b16 %v339, %v337
    %v386 = vpack.c.b16 %v342, %v340
    %v387 = vpack.c.b16 %v343, %v341
    %v388 = vpack.c.b16 %v346, %v344
    %v389 = vpack.c.b16 %v347, %v345
    %v390 = vpack.c.b16 %v350, %v348
    %v391 = vpack.c.b16 %v351, %v349
    %v392 = vpack.c.b16 %v354, %v352
    %v393 = vpack.c.b16 %v355, %v353
    %v394 = vpack.c.b16 %v358, %v356
    %v395 = vpack.c.b16 %v359, %v357
    %v396 = vpack.c.b16 %v362, %v360
    %v397 = vpack.c.b16 %v363, %v361
    %v398 = vpack.c.b16 %v366, %v364
    %v399 = vpack.c.b16 %v367, %v365
    %432 = vmatprep.subr.bf16.mxu0 %v383
    %433 = vmatpush1.bf16.msra.mxu0 %v382
    %434 = vmatprep.subr.bf16.mxu0 %v381
    %435 = vmatpush1.bf16.msra.mxu0 %v380
    %436 = vmatprep.subr.bf16.mxu0 %v379
    %437 = vmatpush1.bf16.msra.mxu0 %v378
    %438 = vmatprep.subr.bf16.mxu0 %v377
    %439 = vmatpush1.bf16.msra.mxu0 %v376
    %440 = vmatprep.subr.bf16.mxu0 %v375
    %441 = vmatpush1.bf16.msra.mxu0 %v374
    %442 = vmatprep.subr.bf16.mxu0 %v373
    %443 = vmatpush1.bf16.msra.mxu0 %v372
    %444 = vmatprep.subr.bf16.mxu0 %v371
    %445 = vmatpush1.bf16.msra.mxu0 %v370
    %446 = vmatprep.subr.bf16.mxu0 %v369
    %447 = vmatpush1.bf16.msra.mxu0 %v368
    %448 = vmatprep.subr.bf16.mxu0 %v399
    %449 = vmatpush2.bf16.msra.mxu0 %v398
    %450 = vmatprep.subr.bf16.mxu0 %v397
    %451 = vmatpush2.bf16.msra.mxu0 %v396
    %452 = vmatprep.subr.bf16.mxu0 %v395
    %453 = vmatpush2.bf16.msra.mxu0 %v394
    %454 = vmatprep.subr.bf16.mxu0 %v393
    %455 = vmatpush2.bf16.msra.mxu0 %v392
    %456 = vmatprep.subr.bf16.mxu0 %v391
    %457 = vmatpush2.bf16.msra.mxu0 %v390
    %458 = vmatprep.subr.bf16.mxu0 %v389
    %459 = vmatpush2.bf16.msra.mxu0 %v388
    %460 = vmatprep.subr.bf16.mxu0 %v387
    %461 = vmatpush2.bf16.msra.mxu0 %v386
    %462 = vmatprep.subr.bf16.mxu0 %v385
    %463 = vmatpush2.bf16.msra.mxu0 %v384
    %464 = vmatprep.mubr.bf16.mxu0 %v226
    %465 = vmatmul.mubr.bf16.gmra.mxu0 %v225
    %v466 = vpop.f32.mrf.mxu0
    %v467 = vadd.f32 %v265, %v466
    %v468 = vpop.f32.mrf.mxu0
    %v469 = vadd.f32 %v269, %v468
    %v470 = vpop.f32.mrf.mxu0
    %v471 = vadd.f32 %v265, %v470
    %v472 = vpop.f32.mrf.mxu0
    %v473 = vadd.f32 %v269, %v472
    %474 = vdwg.mxu0
    %v475 = vmax.f32 %v467, 0.0
    %v476 = vmax.f32 %v469, 0.0
    %v477 = vmax.f32 %v471, 0.0
    %v478 = vmax.f32 %v473, 0.0
    %v479 = vpack.c.bf16 %v477, %v475
    %v480 = vpack.c.bf16 %v478, %v476
    %s481 = scalar_lea.vmem [#allocation4], 256
    %v482 = vld [vmem:[%s481] sm:$0xff]
    %v483 = vld [vmem:[%s481 + $0x8] sm:$0xff]
    %v484 = vld [vmem:[%s481 + $0x10] sm:$0xff]
    %v485 = vld [vmem:[%s481 + $0x18] sm:$0xff]
    %v486 = vld [vmem:[%s481 + $0x20] sm:$0xff]
    %v487 = vld [vmem:[%s481 + $0x28] sm:$0xff]
    %v488 = vld [vmem:[%s481 + $0x30] sm:$0xff]
    %v489 = vld [vmem:[%s481 + $0x38] sm:$0xff]
    %v490 = vld [vmem:[%s481 + $0x40] sm:$0xff]
    %v491 = vld [vmem:[%s481 + $0x48] sm:$0xff]
    %v492 = vld [vmem:[%s481 + $0x50] sm:$0xff]
    %v493 = vld [vmem:[%s481 + $0x58] sm:$0xff]
    %v494 = vld [vmem:[%s481 + $0x60] sm:$0xff]
    %v495 = vld [vmem:[%s481 + $0x68] sm:$0xff]
    %v496 = vld [vmem:[%s481 + $0x70] sm:$0xff]
    %v497 = vld [vmem:[%s481 + $0x78] sm:$0xff]
    %v498 = vld [vmem:[%s481 + $0x80] sm:$0xff]
    %v499 = vld [vmem:[%s481 + $0x88] sm:$0xff]
    %v500 = vld [vmem:[%s481 + $0x90] sm:$0xff]
    %v501 = vld [vmem:[%s481 + $0x98] sm:$0xff]
    %v502 = vld [vmem:[%s481 + $0xa0] sm:$0xff]
    %v503 = vld [vmem:[%s481 + $0xa8] sm:$0xff]
    %v504 = vld [vmem:[%s481 + $0xb0] sm:$0xff]
    %v505 = vld [vmem:[%s481 + $0xb8] sm:$0xff]
    %v506 = vld [vmem:[%s481 + $0xc0] sm:$0xff]
    %v507 = vld [vmem:[%s481 + $0xc8] sm:$0xff]
    %v508 = vld [vmem:[%s481 + $0xd0] sm:$0xff]
    %v509 = vld [vmem:[%s481 + $0xd8] sm:$0xff]
    %v510 = vld [vmem:[%s481 + $0xe0] sm:$0xff]
    %v511 = vld [vmem:[%s481 + $0xe8] sm:$0xff]
    %v512 = vld [vmem:[%s481 + $0xf0] sm:$0xff]
    %v513 = vld [vmem:[%s481 + $0xf8] sm:$0xff]
    %s514 = scalar_lea.vmem %s4, 2
    %v515 = vld [vmem:[%s514] ss:$8 sm:$0x3]
    %v517 = vlaneseq
    %v518 = vshrl.u32 %v517, 7
    %v519 = vsub.s32 0, %v518
    %v520 = vrot.slane %v515, %v519
    %v521 = vlaneseq
    %v522 = vshrl.u32 %v521, 7
    %v523 = vsub.s32 1, %v522
    %v524 = vrot.slane %v515, %v523
    %v559 = vunpack.c.l.b16 %v482
    %v560 = vunpack.c.h.b16 %v482
    %v561 = vunpack.c.l.b16 %v483
    %v562 = vunpack.c.h.b16 %v483
    %v563 = vunpack.c.l.b16 %v484
    %v564 = vunpack.c.h.b16 %v484
    %v565 = vunpack.c.l.b16 %v485
    %v566 = vunpack.c.h.b16 %v485
    %v567 = vunpack.c.l.b16 %v486
    %v568 = vunpack.c.h.b16 %v486
    %v569 = vunpack.c.l.b16 %v487
    %v570 = vunpack.c.h.b16 %v487
    %v571 = vunpack.c.l.b16 %v488
    %v572 = vunpack.c.h.b16 %v488
    %v573 = vunpack.c.l.b16 %v489
    %v574 = vunpack.c.h.b16 %v489
    %v575 = vunpack.c.l.b16 %v490
    %v576 = vunpack.c.h.b16 %v490
    %v577 = vunpack.c.l.b16 %v491
    %v578 = vunpack.c.h.b16 %v491
    %v579 = vunpack.c.l.b16 %v492
    %v580 = vunpack.c.h.b16 %v492
    %v581 = vunpack.c.l.b16 %v493
    %v582 = vunpack.c.h.b16 %v493
    %v583 = vunpack.c.l.b16 %v494
    %v584 = vunpack.c.h.b16 %v494
    %v585 = vunpack.c.l.b16 %v495
    %v586 = vunpack.c.h.b16 %v495
    %v587 = vunpack.c.l.b16 %v496
    %v588 = vunpack.c.h.b16 %v496
    %v589 = vunpack.c.l.b16 %v497
    %v590 = vunpack.c.h.b16 %v497
    %v591 = vunpack.c.l.b16 %v498
    %v592 = vunpack.c.h.b16 %v498
    %v593 = vunpack.c.l.b16 %v499
    %v594 = vunpack.c.h.b16 %v499
    %v595 = vunpack.c.l.b16 %v500
    %v596 = vunpack.c.h.b16 %v500
    %v597 = vunpack.c.l.b16 %v501
    %v598 = vunpack.c.h.b16 %v501
    %v599 = vunpack.c.l.b16 %v502
    %v600 = vunpack.c.h.b16 %v502
    %v601 = vunpack.c.l.b16 %v503
    %v602 = vunpack.c.h.b16 %v503
    %v603 = vunpack.c.l.b16 %v504
    %v604 = vunpack.c.h.b16 %v504
    %v605 = vunpack.c.l.b16 %v505
    %v606 = vunpack.c.h.b16 %v505
    %v607 = vunpack.c.l.b16 %v506
    %v608 = vunpack.c.h.b16 %v506
    %v609 = vunpack.c.l.b16 %v507
    %v610 = vunpack.c.h.b16 %v507
    %v611 = vunpack.c.l.b16 %v508
    %v612 = vunpack.c.h.b16 %v508
    %v613 = vunpack.c.l.b16 %v509
    %v614 = vunpack.c.h.b16 %v509
    %v615 = vunpack.c.l.b16 %v510
    %v616 = vunpack.c.h.b16 %v510
    %v617 = vunpack.c.l.b16 %v511
    %v618 = vunpack.c.h.b16 %v511
    %v619 = vunpack.c.l.b16 %v512
    %v620 = vunpack.c.h.b16 %v512
    %v621 = vunpack.c.l.b16 %v513
    %v622 = vunpack.c.h.b16 %v513
    %v623 = vpack.c.b16 %v561, %v559
    %v624 = vpack.c.b16 %v562, %v560
    %v625 = vpack.c.b16 %v565, %v563
    %v626 = vpack.c.b16 %v566, %v564
    %v627 = vpack.c.b16 %v569, %v567
    %v628 = vpack.c.b16 %v570, %v568
    %v629 = vpack.c.b16 %v573, %v571
    %v630 = vpack.c.b16 %v574, %v572
    %v631 = vpack.c.b16 %v577, %v575
    %v632 = vpack.c.b16 %v578, %v576
    %v633 = vpack.c.b16 %v581, %v579
    %v634 = vpack.c.b16 %v582, %v580
    %v635 = vpack.c.b16 %v585, %v583
    %v636 = vpack.c.b16 %v586, %v584
    %v637 = vpack.c.b16 %v589, %v587
    %v638 = vpack.c.b16 %v590, %v588
    %v639 = vpack.c.b16 %v593, %v591
    %v640 = vpack.c.b16 %v594, %v592
    %v641 = vpack.c.b16 %v597, %v595
    %v642 = vpack.c.b16 %v598, %v596
    %v643 = vpack.c.b16 %v601, %v599
    %v644 = vpack.c.b16 %v602, %v600
    %v645 = vpack.c.b16 %v605, %v603
    %v646 = vpack.c.b16 %v606, %v604
    %v647 = vpack.c.b16 %v609, %v607
    %v648 = vpack.c.b16 %v610, %v608
    %v649 = vpack.c.b16 %v613, %v611
    %v650 = vpack.c.b16 %v614, %v612
    %v651 = vpack.c.b16 %v617, %v615
    %v652 = vpack.c.b16 %v618, %v616
    %v653 = vpack.c.b16 %v621, %v619
    %v654 = vpack.c.b16 %v622, %v620
    %687 = vmatprep.subr.bf16.mxu0 %v638
    %688 = vmatpush1.bf16.msra.mxu0 %v637
    %689 = vmatprep.subr.bf16.mxu0 %v636
    %690 = vmatpush1.bf16.msra.mxu0 %v635
    %691 = vmatprep.subr.bf16.mxu0 %v634
    %692 = vmatpush1.bf16.msra.mxu0 %v633
    %693 = vmatprep.subr.bf16.mxu0 %v632
    %694 = vmatpush1.bf16.msra.mxu0 %v631
    %695 = vmatprep.subr.bf16.mxu0 %v630
    %696 = vmatpush1.bf16.msra.mxu0 %v629
    %697 = vmatprep.subr.bf16.mxu0 %v628
    %698 = vmatpush1.bf16.msra.mxu0 %v627
    %699 = vmatprep.subr.bf16.mxu0 %v626
    %700 = vmatpush1.bf16.msra.mxu0 %v625
    %701 = vmatprep.subr.bf16.mxu0 %v624
    %702 = vmatpush1.bf16.msra.mxu0 %v623
    %703 = vmatprep.subr.bf16.mxu0 %v654
    %704 = vmatpush2.bf16.msra.mxu0 %v653
    %705 = vmatprep.subr.bf16.mxu0 %v652
    %706 = vmatpush2.bf16.msra.mxu0 %v651
    %707 = vmatprep.subr.bf16.mxu0 %v650
    %708 = vmatpush2.bf16.msra.mxu0 %v649
    %709 = vmatprep.subr.bf16.mxu0 %v648
    %710 = vmatpush2.bf16.msra.mxu0 %v647
    %711 = vmatprep.subr.bf16.mxu0 %v646
    %712 = vmatpush2.bf16.msra.mxu0 %v645
    %713 = vmatprep.subr.bf16.mxu0 %v644
    %714 = vmatpush2.bf16.msra.mxu0 %v643
    %715 = vmatprep.subr.bf16.mxu0 %v642
    %716 = vmatpush2.bf16.msra.mxu0 %v641
    %717 = vmatprep.subr.bf16.mxu0 %v640
    %718 = vmatpush2.bf16.msra.mxu0 %v639
    %719 = vmatprep.mubr.bf16.mxu0 %v480
    %720 = vmatmul.mubr.bf16.gmra.mxu0 %v479
    %v721 = vpop.f32.mrf.mxu0
    %v722 = vadd.f32 %v520, %v721
    %v723 = vpop.f32.mrf.mxu0
    %v724 = vadd.f32 %v524, %v723
    %v725 = vpop.f32.mrf.mxu0
    %v726 = vadd.f32 %v520, %v725
    %v727 = vpop.f32.mrf.mxu0
    %v728 = vadd.f32 %v524, %v727
    %729 = vdwg.mxu0
    %v730 = vmax.f32 %v722, 0.0
    %v731 = vmax.f32 %v724, 0.0
    %v732 = vmax.f32 %v726, 0.0
    %v733 = vmax.f32 %v728, 0.0
    %v734 = vpack.c.bf16 %v732, %v730
    %v735 = vpack.c.bf16 %v733, %v731
    %s736 = scalar_lea.vmem [#allocation4], 512
    %v737 = vld [vmem:[%s736] sm:$0xff]
    %v738 = vld [vmem:[%s736 + $0x8] sm:$0xff]
    %v739 = vld [vmem:[%s736 + $0x10] sm:$0xff]
    %v740 = vld [vmem:[%s736 + $0x18] sm:$0xff]
    %v741 = vld [vmem:[%s736 + $0x20] sm:$0xff]
    %v742 = vld [vmem:[%s736 + $0x28] sm:$0xff]
    %v743 = vld [vmem:[%s736 + $0x30] sm:$0xff]
    %v744 = vld [vmem:[%s736 + $0x38] sm:$0xff]
    %v745 = vld [vmem:[%s736 + $0x40] sm:$0xff]
    %v746 = vld [vmem:[%s736 + $0x48] sm:$0xff]
    %v747 = vld [vmem:[%s736 + $0x50] sm:$0xff]
    %v748 = vld [vmem:[%s736 + $0x58] sm:$0xff]
    %v749 = vld [vmem:[%s736 + $0x60] sm:$0xff]
    %v750 = vld [vmem:[%s736 + $0x68] sm:$0xff]
    %v751 = vld [vmem:[%s736 + $0x70] sm:$0xff]
    %v752 = vld [vmem:[%s736 + $0x78] sm:$0xff]
    %v753 = vld [vmem:[%s736 + $0x80] sm:$0xff]
    %v754 = vld [vmem:[%s736 + $0x88] sm:$0xff]
    %v755 = vld [vmem:[%s736 + $0x90] sm:$0xff]
    %v756 = vld [vmem:[%s736 + $0x98] sm:$0xff]
    %v757 = vld [vmem:[%s736 + $0xa0] sm:$0xff]
    %v758 = vld [vmem:[%s736 + $0xa8] sm:$0xff]
    %v759 = vld [vmem:[%s736 + $0xb0] sm:$0xff]
    %v760 = vld [vmem:[%s736 + $0xb8] sm:$0xff]
    %v761 = vld [vmem:[%s736 + $0xc0] sm:$0xff]
    %v762 = vld [vmem:[%s736 + $0xc8] sm:$0xff]
    %v763 = vld [vmem:[%s736 + $0xd0] sm:$0xff]
    %v764 = vld [vmem:[%s736 + $0xd8] sm:$0xff]
    %v765 = vld [vmem:[%s736 + $0xe0] sm:$0xff]
    %v766 = vld [vmem:[%s736 + $0xe8] sm:$0xff]
    %v767 = vld [vmem:[%s736 + $0xf0] sm:$0xff]
    %v768 = vld [vmem:[%s736 + $0xf8] sm:$0xff]
    %s769 = scalar_lea.vmem %s4, 3
    %v770 = vld [vmem:[%s769] ss:$8 sm:$0x3]
    %v772 = vlaneseq
    %v773 = vshrl.u32 %v772, 7
    %v774 = vsub.s32 0, %v773
    %v775 = vrot.slane %v770, %v774
    %v776 = vlaneseq
    %v777 = vshrl.u32 %v776, 7
    %v778 = vsub.s32 1, %v777
    %v779 = vrot.slane %v770, %v778
    %v814 = vunpack.c.l.b16 %v737
    %v815 = vunpack.c.h.b16 %v737
    %v816 = vunpack.c.l.b16 %v738
    %v817 = vunpack.c.h.b16 %v738
    %v818 = vunpack.c.l.b16 %v739
    %v819 = vunpack.c.h.b16 %v739
    %v820 = vunpack.c.l.b16 %v740
    %v821 = vunpack.c.h.b16 %v740
    %v822 = vunpack.c.l.b16 %v741
    %v823 = vunpack.c.h.b16 %v741
    %v824 = vunpack.c.l.b16 %v742
    %v825 = vunpack.c.h.b16 %v742
    %v826 = vunpack.c.l.b16 %v743
    %v827 = vunpack.c.h.b16 %v743
    %v828 = vunpack.c.l.b16 %v744
    %v829 = vunpack.c.h.b16 %v744
    %v830 = vunpack.c.l.b16 %v745
    %v831 = vunpack.c.h.b16 %v745
    %v832 = vunpack.c.l.b16 %v746
    %v833 = vunpack.c.h.b16 %v746
    %v834 = vunpack.c.l.b16 %v747
    %v835 = vunpack.c.h.b16 %v747
    %v836 = vunpack.c.l.b16 %v748
    %v837 = vunpack.c.h.b16 %v748
    %v838 = vunpack.c.l.b16 %v749
    %v839 = vunpack.c.h.b16 %v749
    %v840 = vunpack.c.l.b16 %v750
    %v841 = vunpack.c.h.b16 %v750
    %v842 = vunpack.c.l.b16 %v751
    %v843 = vunpack.c.h.b16 %v751
    %v844 = vunpack.c.l.b16 %v752
    %v845 = vunpack.c.h.b16 %v752
    %v846 = vunpack.c.l.b16 %v753
    %v847 = vunpack.c.h.b16 %v753
    %v848 = vunpack.c.l.b16 %v754
    %v849 = vunpack.c.h.b16 %v754
    %v850 = vunpack.c.l.b16 %v755
    %v851 = vunpack.c.h.b16 %v755
    %v852 = vunpack.c.l.b16 %v756
    %v853 = vunpack.c.h.b16 %v756
    %v854 = vunpack.c.l.b16 %v757
    %v855 = vunpack.c.h.b16 %v757
    %v856 = vunpack.c.l.b16 %v758
    %v857 = vunpack.c.h.b16 %v758
    %v858 = vunpack.c.l.b16 %v759
    %v859 = vunpack.c.h.b16 %v759
    %v860 = vunpack.c.l.b16 %v760
    %v861 = vunpack.c.h.b16 %v760
    %v862 = vunpack.c.l.b16 %v761
    %v863 = vunpack.c.h.b16 %v761
    %v864 = vunpack.c.l.b16 %v762
    %v865 = vunpack.c.h.b16 %v762
    %v866 = vunpack.c.l.b16 %v763
    %v867 = vunpack.c.h.b16 %v763
    %v868 = vunpack.c.l.b16 %v764
    %v869 = vunpack.c.h.b16 %v764
    %v870 = vunpack.c.l.b16 %v765
    %v871 = vunpack.c.h.b16 %v765
    %v872 = vunpack.c.l.b16 %v766
    %v873 = vunpack.c.h.b16 %v766
    %v874 = vunpack.c.l.b16 %v767
    %v875 = vunpack.c.h.b16 %v767
    %v876 = vunpack.c.l.b16 %v768
    %v877 = vunpack.c.h.b16 %v768
    %v878 = vpack.c.b16 %v816, %v814
    %v879 = vpack.c.b16 %v817, %v815
    %v880 = vpack.c.b16 %v820, %v818
    %v881 = vpack.c.b16 %v821, %v819
    %v882 = vpack.c.b16 %v824, %v822
    %v883 = vpack.c.b16 %v825, %v823
    %v884 = vpack.c.b16 %v828, %v826
    %v885 = vpack.c.b16 %v829, %v827
    %v886 = vpack.c.b16 %v832, %v830
    %v887 = vpack.c.b16 %v833, %v831
    %v888 = vpack.c.b16 %v836, %v834
    %v889 = vpack.c.b16 %v837, %v835
    %v890 = vpack.c.b16 %v840, %v838
    %v891 = vpack.c.b16 %v841, %v839
    %v892 = vpack.c.b16 %v844, %v842
    %v893 = vpack.c.b16 %v845, %v843
    %v894 = vpack.c.b16 %v848, %v846
    %v895 = vpack.c.b16 %v849, %v847
    %v896 = vpack.c.b16 %v852, %v850
    %v897 = vpack.c.b16 %v853, %v851
    %v898 = vpack.c.b16 %v856, %v854
    %v899 = vpack.c.b16 %v857, %v855
    %v900 = vpack.c.b16 %v860, %v858
    %v901 = vpack.c.b16 %v861, %v859
    %v902 = vpack.c.b16 %v864, %v862
    %v903 = vpack.c.b16 %v865, %v863
    %v904 = vpack.c.b16 %v868, %v866
    %v905 = vpack.c.b16 %v869, %v867
    %v906 = vpack.c.b16 %v872, %v870
    %v907 = vpack.c.b16 %v873, %v871
    %v908 = vpack.c.b16 %v876, %v874
    %v909 = vpack.c.b16 %v877, %v875
    %942 = vmatprep.subr.bf16.mxu0 %v893
    %943 = vmatpush1.bf16.msra.mxu0 %v892
    %944 = vmatprep.subr.bf16.mxu0 %v891
    %945 = vmatpush1.bf16.msra.mxu0 %v890
    %946 = vmatprep.subr.bf16.mxu0 %v889
    %947 = vmatpush1.bf16.msra.mxu0 %v888
    %948 = vmatprep.subr.bf16.mxu0 %v887
    %949 = vmatpush1.bf16.msra.mxu0 %v886
    %950 = vmatprep.subr.bf16.mxu0 %v885
    %951 = vmatpush1.bf16.msra.mxu0 %v884
    %952 = vmatprep.subr.bf16.mxu0 %v883
    %953 = vmatpush1.bf16.msra.mxu0 %v882
    %954 = vmatprep.subr.bf16.mxu0 %v881
    %955 = vmatpush1.bf16.msra.mxu0 %v880
    %956 = vmatprep.subr.bf16.mxu0 %v879
    %957 = vmatpush1.bf16.msra.mxu0 %v878
    %958 = vmatprep.subr.bf16.mxu0 %v909
    %959 = vmatpush2.bf16.msra.mxu0 %v908
    %960 = vmatprep.subr.bf16.mxu0 %v907
    %961 = vmatpush2.bf16.msra.mxu0 %v906
    %962 = vmatprep.subr.bf16.mxu0 %v905
    %963 = vmatpush2.bf16.msra.mxu0 %v904
    %964 = vmatprep.subr.bf16.mxu0 %v903
    %965 = vmatpush2.bf16.msra.mxu0 %v902
    %966 = vmatprep.subr.bf16.mxu0 %v901
    %967 = vmatpush2.bf16.msra.mxu0 %v900
    %968 = vmatprep.subr.bf16.mxu0 %v899
    %969 = vmatpush2.bf16.msra.mxu0 %v898
    %970 = vmatprep.subr.bf16.mxu0 %v897
    %971 = vmatpush2.bf16.msra.mxu0 %v896
    %972 = vmatprep.subr.bf16.mxu0 %v895
    %973 = vmatpush2.bf16.msra.mxu0 %v894
    %974 = vmatprep.mubr.bf16.mxu0 %v735
    %975 = vmatmul.mubr.bf16.gmra.mxu0 %v734
    %v976 = vpop.f32.mrf.mxu0
    %v977 = vadd.f32 %v775, %v976
    %v978 = vpop.f32.mrf.mxu0
    %v979 = vadd.f32 %v779, %v978
    %v980 = vpop.f32.mrf.mxu0
    %v981 = vadd.f32 %v775, %v980
    %v982 = vpop.f32.mrf.mxu0
    %v983 = vadd.f32 %v779, %v982
    %984 = vdwg.mxu0
    %v985 = vmax.f32 %v977, 0.0
    %v986 = vmax.f32 %v979, 0.0
    %v987 = vmax.f32 %v981, 0.0
    %v988 = vmax.f32 %v983, 0.0
    %v989 = vpack.c.bf16 %v987, %v985
    %v990 = vpack.c.bf16 %v988, %v986
    %v991 = vld [vmem:[#allocation6] sm:$0xf]
    %v992 = vld [vmem:[#allocation6 + $0x4] sm:$0xf]
    %v993 = vld [vmem:[#allocation6 + $0x8] sm:$0xf]
    %v994 = vld [vmem:[#allocation6 + $0xc] sm:$0xf]
    %v995 = vld [vmem:[#allocation6 + $0x10] sm:$0xf]
    %v996 = vld [vmem:[#allocation6 + $0x14] sm:$0xf]
    %v997 = vld [vmem:[#allocation6 + $0x18] sm:$0xf]
    %v998 = vld [vmem:[#allocation6 + $0x1c] sm:$0xf]
    %v999 = vld [vmem:[#allocation6 + $0x20] sm:$0xf]
    %v1000 = vld [vmem:[#allocation6 + $0x24] sm:$0xf]
    %v1001 = vld [vmem:[#allocation6 + $0x28] sm:$0xf]
    %v1002 = vld [vmem:[#allocation6 + $0x2c] sm:$0xf]
    %v1003 = vld [vmem:[#allocation6 + $0x30] sm:$0xf]
    %v1004 = vld [vmem:[#allocation6 + $0x34] sm:$0xf]
    %v1005 = vld [vmem:[#allocation6 + $0x38] sm:$0xf]
    %v1006 = vld [vmem:[#allocation6 + $0x3c] sm:$0xf]
    %v1007 = vld [vmem:[#allocation6 + $0x40] sm:$0xf]
    %v1008 = vld [vmem:[#allocation6 + $0x44] sm:$0xf]
    %v1009 = vld [vmem:[#allocation6 + $0x48] sm:$0xf]
    %v1010 = vld [vmem:[#allocation6 + $0x4c] sm:$0xf]
    %v1011 = vld [vmem:[#allocation6 + $0x50] sm:$0xf]
    %v1012 = vld [vmem:[#allocation6 + $0x54] sm:$0xf]
    %v1013 = vld [vmem:[#allocation6 + $0x58] sm:$0xf]
    %v1014 = vld [vmem:[#allocation6 + $0x5c] sm:$0xf]
    %v1015 = vld [vmem:[#allocation6 + $0x60] sm:$0xf]
    %v1016 = vld [vmem:[#allocation6 + $0x64] sm:$0xf]
    %v1017 = vld [vmem:[#allocation6 + $0x68] sm:$0xf]
    %v1018 = vld [vmem:[#allocation6 + $0x6c] sm:$0xf]
    %v1019 = vld [vmem:[#allocation6 + $0x70] sm:$0xf]
    %v1020 = vld [vmem:[#allocation6 + $0x74] sm:$0xf]
    %v1021 = vld [vmem:[#allocation6 + $0x78] sm:$0xf]
    %v1022 = vld [vmem:[#allocation6 + $0x7c] sm:$0xf]
    %v1023 = vld [vmem:[%s4 + $0x4] ss:$0 sm:$0xff]
    %v1056 = vunpack.c.l.b16 %v991
    %v1057 = vunpack.c.l.b16 %v992
    %v1058 = vunpack.c.l.b16 %v993
    %v1059 = vunpack.c.l.b16 %v994
    %v1060 = vunpack.c.l.b16 %v995
    %v1061 = vunpack.c.l.b16 %v996
    %v1062 = vunpack.c.l.b16 %v997
    %v1063 = vunpack.c.l.b16 %v998
    %v1064 = vunpack.c.l.b16 %v999
    %v1065 = vunpack.c.l.b16 %v1000
    %v1066 = vunpack.c.l.b16 %v1001
    %v1067 = vunpack.c.l.b16 %v1002
    %v1068 = vunpack.c.l.b16 %v1003
    %v1069 = vunpack.c.l.b16 %v1004
    %v1070 = vunpack.c.l.b16 %v1005
    %v1071 = vunpack.c.l.b16 %v1006
    %v1072 = vunpack.c.l.b16 %v1007
    %v1073 = vunpack.c.l.b16 %v1008
    %v1074 = vunpack.c.l.b16 %v1009
    %v1075 = vunpack.c.l.b16 %v1010
    %v1076 = vunpack.c.l.b16 %v1011
    %v1077 = vunpack.c.l.b16 %v1012
    %v1078 = vunpack.c.l.b16 %v1013
    %v1079 = vunpack.c.l.b16 %v1014
    %v1080 = vunpack.c.l.b16 %v1015
    %v1081 = vunpack.c.l.b16 %v1016
    %v1082 = vunpack.c.l.b16 %v1017
    %v1083 = vunpack.c.l.b16 %v1018
    %v1084 = vunpack.c.l.b16 %v1019
    %v1085 = vunpack.c.l.b16 %v1020
    %v1086 = vunpack.c.l.b16 %v1021
    %v1087 = vunpack.c.l.b16 %v1022
    %v1088 = vpack.c.b16 %v1057, %v1056
    %v1089 = vpack.c.b16 %v1059, %v1058
    %v1090 = vpack.c.b16 %v1061, %v1060
    %v1091 = vpack.c.b16 %v1063, %v1062
    %v1092 = vpack.c.b16 %v1065, %v1064
    %v1093 = vpack.c.b16 %v1067, %v1066
    %v1094 = vpack.c.b16 %v1069, %v1068
    %v1095 = vpack.c.b16 %v1071, %v1070
    %v1096 = vpack.c.b16 %v1073, %v1072
    %v1097 = vpack.c.b16 %v1075, %v1074
    %v1098 = vpack.c.b16 %v1077, %v1076
    %v1099 = vpack.c.b16 %v1079, %v1078
    %v1100 = vpack.c.b16 %v1081, %v1080
    %v1101 = vpack.c.b16 %v1083, %v1082
    %v1102 = vpack.c.b16 %v1085, %v1084
    %v1103 = vpack.c.b16 %v1087, %v1086
    %1120 = vmatprep.subr.bf16.mxu0 0
    %1121 = vmatpush1.bf16.msra.mxu0 %v1095
    %1122 = vmatprep.subr.bf16.mxu0 0
    %1123 = vmatpush1.bf16.msra.mxu0 %v1094
    %1124 = vmatprep.subr.bf16.mxu0 0
    %1125 = vmatpush1.bf16.msra.mxu0 %v1093
    %1126 = vmatprep.subr.bf16.mxu0 0
    %1127 = vmatpush1.bf16.msra.mxu0 %v1092
    %1128 = vmatprep.subr.bf16.mxu0 0
    %1129 = vmatpush1.bf16.msra.mxu0 %v1091
    %1130 = vmatprep.subr.bf16.mxu0 0
    %1131 = vmatpush1.bf16.msra.mxu0 %v1090
    %1132 = vmatprep.subr.bf16.mxu0 0
    %1133 = vmatpush1.bf16.msra.mxu0 %v1089
    %1134 = vmatprep.subr.bf16.mxu0 0
    %1135 = vmatpush1.bf16.msra.mxu0 %v1088
    %1136 = vmatprep.subr.bf16.mxu0 0
    %1137 = vmatpush2.bf16.msra.mxu0 %v1103
    %1138 = vmatprep.subr.bf16.mxu0 0
    %1139 = vmatpush2.bf16.msra.mxu0 %v1102
    %1140 = vmatprep.subr.bf16.mxu0 0
    %1141 = vmatpush2.bf16.msra.mxu0 %v1101
    %1142 = vmatprep.subr.bf16.mxu0 0
    %1143 = vmatpush2.bf16.msra.mxu0 %v1100
    %1144 = vmatprep.subr.bf16.mxu0 0
    %1145 = vmatpush2.bf16.msra.mxu0 %v1099
    %1146 = vmatprep.subr.bf16.mxu0 0
    %1147 = vmatpush2.bf16.msra.mxu0 %v1098
    %1148 = vmatprep.subr.bf16.mxu0 0
    %1149 = vmatpush2.bf16.msra.mxu0 %v1097
    %1150 = vmatprep.subr.bf16.mxu0 0
    %1151 = vmatpush2.bf16.msra.mxu0 %v1096
    %1152 = vmatprep.mubr.bf16.mxu0 %v990
    %1153 = vmatmul.mubr.bf16.gmra.mxu0 %v989
    %v1154 = vpop.f32.mrf.mxu0
    %v1155 = vadd.f32 %v1023, %v1154
    %v1156 = vpop.f32.mrf.mxu0
    %v1157 = vpop.f32.mrf.mxu0
    %v1158 = vadd.f32 %v1023, %v1157
    %v1159 = vpop.f32.mrf.mxu0
    %1160 = vdwg.mxu0
    %1161 = vst [vmem:[%s5] sm:$0xff] %v1155
    %1162 = vst [vmem:[%s5 + $0x8] sm:$0xff] %v1158
    // Predicated region
    $region34: #{net_forward.1} parent=1 // pred_check
      _
    $region35: #{net_forward.1} parent=1 // pred_check_branch
      %1164 = sbr.rel (0) target = $region37
    $region36: #{net_forward.1} parent=1 // pred_region
      _
    $region37: #{net_forward.1} parent=1 // pred_fallthru
      _
    // Predicated region
    $region38: #{net_forward.1} parent=1 // pred_check
      _
    $region39: #{net_forward.1} parent=1 // pred_check_branch
      %1166 = sbr.rel (0) target = $region41
    $region40: #{net_forward.1} parent=1 // pred_region
      _
    $region41: #{net_forward.1} parent=1 // pred_fallthru
      _
    %1167 = vsyncpa [#allocation3], 1
    %1168 = vsyncpa [#allocation5], 1

</llo_original>
